<compile_context>
chip_gen: v6e
topology: v6e:2x2x1
jax: 0.10.0
libtpu: 0.0.40
codegen_flags: <defaults>
</compile_context>

<pallas_src>
import functools

import jax
import jax.numpy as jnp
from jax import lax
from jax.experimental import pallas as pl
from jax.experimental.pallas import tpu as pltpu


_DEFAULT_MAX_TILE_M = 16384      # rows per grid step (multiple of 8 when tiling)
_VMEM_LIMIT_BYTES = 48 << 20     # 2 inputs x 2 buffers x ~8 MiB @ tile 16384


def _cdiv(a: int, b: int) -> int:
    return -(-a // b)


def _ich_log_loss_kernel(p_ref, t_ref, out_ref, acc_ref, *,
                         n_true, tile_m, steps_per_core, ragged):
    c = pl.program_id(0)   # TensorCore split ("parallel")
    i = pl.program_id(1)   # batch-tile step   ("arbitrary")

    @pl.when(i == 0)
    def _init():
        acc_ref[...] = jnp.zeros_like(acc_ref)

    x = p_ref[...].astype(jnp.float32)
    t = t_ref[...].astype(jnp.float32)

    # Numerically stable binary_cross_entropy_with_logits (reduction='none'):
    #   max(x, 0) - x*t + log1p(exp(-|x|))
    bce = jnp.maximum(x, 0.0) - x * t + jnp.log1p(jnp.exp(-jnp.abs(x)))

    def _accum(v):
        # Per-step reduce (tile_m, 6) -> (1, 6): keeps the accumulator to one
        # vreg and makes the final epilogue reduce trivial.
        acc_ref[...] += jnp.sum(v, axis=0, keepdims=True)

    if ragged:
        # Only partial / phantom blocks pay for the mask (runtime gate).
        start = (c * steps_per_core + i) * tile_m
        valid = n_true - start   # in-bounds rows of this logical block

        @pl.when(valid >= tile_m)
        def _full_block():
            _accum(bce)

        @pl.when(valid < tile_m)
        def _partial_block():
            # Select (not multiply): OOB rows may hold undefined data (NaN/Inf).
            row = lax.broadcasted_iota(jnp.int32, bce.shape, 0)
            _accum(jnp.where(row < valid, bce, 0.0))
    else:
        _accum(bce)

    @pl.when(i == steps_per_core - 1)
    def _finalize():
        a = acc_ref[...]                                   # (1, 6) class sums
        col = lax.broadcasted_iota(jnp.int32, a.shape, 1)
        w = jnp.where(col == 0, 2.0, 1.0)                  # class-0 weight = 2
        num = jnp.sum(a * w)                               # per-core numerator
        out_ref[...] = jnp.full(out_ref.shape, num, dtype=out_ref.dtype)


def ich_log_loss(logits: jax.Array, y: jax.Array, *,
                 max_tile_m: int = _DEFAULT_MAX_TILE_M) -> jax.Array:
    """Pallas equivalent of ICHLogLoss.forward -> scalar loss."""
    assert logits.shape == y.shape
    n, cls = logits.shape
    assert cls == 6, "ICHLogLoss expects 6 classes"

    # Native (N, 6) layout: no transpose, no pad.
    if n <= max_tile_m:
        tile_m = n                              # single full-array block
    else:
        tile_m = max(8, (max_tile_m // 8) * 8)  # multiple of 8 when tiling

    n_blocks = _cdiv(n, tile_m)
    num_splits = 2 if n_blocks >= 2 else 1      # v7x: one TC per split
    steps_per_core = _cdiv(n_blocks, num_splits)
    total_logical = num_splits * steps_per_core
    ragged = (total_logical * tile_m != n)      # partial and/or phantom blocks

    if total_logical > n_blocks:
        # Phantom trailing block(s) on the second split: clamp the DMA index
        # to the last real block; the in-kernel mask zeroes its contribution.
        def row_map(ci, ii):
            return (jnp.minimum(ci * steps_per_core + ii, n_blocks - 1), 0)
    else:
        def row_map(ci, ii):
            return (ci * steps_per_core + ii, 0)

    itemsize = jnp.dtype(logits.dtype).itemsize
    cost = pl.CostEstimate(
        flops=8 * n * 6,
        transcendentals=2 * n * 6,
        bytes_accessed=2 * n * 6 * itemsize + num_splits * 4,
    )

    kernel = functools.partial(
        _ich_log_loss_kernel,
        n_true=n, tile_m=tile_m, steps_per_core=steps_per_core, ragged=ragged,
    )

    out = pl.pallas_call(
        kernel,
        out_shape=jax.ShapeDtypeStruct((num_splits, 8, 128), jnp.float32),
        grid=(num_splits, steps_per_core),
        in_specs=[
            pl.BlockSpec((tile_m, 6), row_map),
            pl.BlockSpec((tile_m, 6), row_map),
        ],
        out_specs=pl.BlockSpec((1, 8, 128), lambda ci, ii: (ci, 0, 0)),
        scratch_shapes=[pltpu.VMEM((1, 6), jnp.float32)],
        compiler_params=pltpu.CompilerParams(
            dimension_semantics=("parallel", "arbitrary"),
            vmem_limit_bytes=_VMEM_LIMIT_BYTES,
        ),
        cost_estimate=cost,
    )(logits, y)

    # Combine per-core numerators; sum(weights) = 7 * N.
    return jnp.sum(out[:, 0, 0]) / (7.0 * n)


def _reference(logits, y):
    x = logits.astype(jnp.float32)
    t = y.astype(jnp.float32)
    bce = jnp.maximum(x, 0.0) - x * t + jnp.log1p(jnp.exp(-jnp.abs(x)))
    w = jnp.ones_like(bce).at[:, 0].set(2.0)
    return jnp.sum(bce * w) / jnp.sum(w)


if __name__ == "__main__":
    key = jax.random.PRNGKey(0)
    k1, k2, k3, k4 = jax.random.split(key, 4)

    # Case 1: small batch (module's typical regime) -> single block, grid (1,1).
    n1 = 8
    logits1 = jax.random.normal(k1, (n1, 6), dtype=jnp.float32)
    y1 = (jax.random.uniform(k2, (n1, 6)) > 0.5).astype(jnp.float32)
    l1 = ich_log_loss(logits1, y1)
    jax.block_until_ready(l1)
    r1 = _reference(logits1, y1)
    assert jnp.allclose(l1, r1, rtol=1e-5, atol=1e-5), (l1, r1)

    # Case 2: batch not a multiple of 8, still one full-array block (no pad).
    n2 = 300
    logits2 = jax.random.normal(k3, (n2, 6), dtype=jnp.float32)
    y2 = (jax.random.uniform(k4, (n2, 6)) > 0.5).astype(jnp.float32)
    l2 = ich_log_loss(logits2, y2)
    jax.block_until_ready(l2)
    r2 = _reference(logits2, y2)
    assert jnp.allclose(l2, r2, rtol=1e-5, atol=1e-5), (l2, r2)

    # Case 3: force the tiled path (2-way core split, ragged tail, phantom
    # block with clamped index) at a small size.
    l3 = ich_log_loss(logits2, y2, max_tile_m=128)
    jax.block_until_ready(l3)
    assert jnp.allclose(l3, r2, rtol=1e-5, atol=1e-5), (l3, r2)

    print("KERNEL_OK")
</pallas_src>

<mosaic_0001>
module attributes {stable_mosaic.version = 11 : i64} {
  func.func @_ich_log_loss_kernel(%arg0: i32, %arg1: i32, %arg2: memref<8x6xf32, #tpu.memory_space<vmem>>, %arg3: memref<8x6xf32, #tpu.memory_space<vmem>>, %arg4: memref<1x8x128xf32, #tpu.memory_space<vmem>>, %arg5: memref<1x6xf32, #tpu.memory_space<vmem>>) attributes {dimension_semantics = [#tpu.dimension_semantics<parallel>, #tpu.dimension_semantics<arbitrary>], iteration_bounds = array<i64: 1, 1>, scalar_prefetch = 0 : i64, scratch_operands = 1 : i64, tpu.core_type = #tpu.core_type<tc>, window_params = [{transform_indices = @transform_0, window_bounds = array<i64: 8, 6>}, {transform_indices = @transform_1, window_bounds = array<i64: 8, 6>}, {transform_indices = @transform_2, window_bounds = array<i64: 1, 8, 128>}]} {
    %c0_i32 = arith.constant 0 : i32
    %0 = arith.cmpi eq, %arg1, %c0_i32 : i32
    %1 = arith.extui %0 : i1 to i32
    %c0_i32_0 = arith.constant 0 : i32
    %2 = arith.cmpi ne, %1, %c0_i32_0 : i32
    scf.if %2 {
      %cst_12 = arith.constant 0.000000e+00 : f32
      %23 = vector.broadcast %cst_12 : f32 to vector<1x6xf32>
      %c0_13 = arith.constant 0 : index
      %c0_14 = arith.constant 0 : index
      %24 = vector.load %arg5[%c0_13, %c0_14] : memref<1x6xf32, #tpu.memory_space<vmem>>, vector<1x6xf32>
      tpu.vector_store %arg5[%c0_13, %c0_14], %23 {strides = array<i32>} : memref<1x6xf32, #tpu.memory_space<vmem>>, vector<1x6xf32>,
    } else {
    }
    %c0 = arith.constant 0 : index
    %c0_1 = arith.constant 0 : index
    %3 = vector.load %arg2[%c0, %c0_1] : memref<8x6xf32, #tpu.memory_space<vmem>>, vector<8x6xf32>
    %c0_2 = arith.constant 0 : index
    %c0_3 = arith.constant 0 : index
    %4 = vector.load %arg3[%c0_2, %c0_3] : memref<8x6xf32, #tpu.memory_space<vmem>>, vector<8x6xf32>
    %cst = arith.constant 0.000000e+00 : f32
    %5 = vector.broadcast %cst : f32 to vector<8x6xf32>
    %6 = arith.maximumf %3, %5 : vector<8x6xf32>
    %7 = arith.mulf %3, %4 : vector<8x6xf32>
    %8 = arith.subf %6, %7 : vector<8x6xf32>
    %9 = math.absf %3 : vector<8x6xf32>
    %cst_4 = arith.constant 0.000000e+00 : f32
    %10 = vector.broadcast %cst_4 : f32 to vector<8x6xf32>
    %11 = arith.subf %10, %9 : vector<8x6xf32>
    %12 = math.exp %11 : vector<8x6xf32>
    %13 = math.log1p %12 : vector<8x6xf32>
    %14 = arith.addf %8, %13 : vector<8x6xf32>
    %c0_5 = arith.constant 0 : index
    %c0_6 = arith.constant 0 : index
    %15 = vector.load %arg5[%c0_5, %c0_6] : memref<1x6xf32, #tpu.memory_space<vmem>>, vector<1x6xf32>
    %cst_7 = arith.constant dense<0.000000e+00> : vector<6xf32>
    %16 = vector.multi_reduction <add>, %14, %cst_7 [0] : vector<8x6xf32> to vector<6xf32>
    %17 = vector.shape_cast %16 : vector<6xf32> to vector<1x6xf32>
    %18 = arith.addf %15, %17 : vector<1x6xf32>
    %c0_8 = arith.constant 0 : index
    %c0_9 = arith.constant 0 : index
    %19 = vector.load %arg5[%c0_8, %c0_9] : memref<1x6xf32, #tpu.memory_space<vmem>>, vector<1x6xf32>
    tpu.vector_store %arg5[%c0_8, %c0_9], %18 {strides = array<i32>} : memref<1x6xf32, #tpu.memory_space<vmem>>, vector<1x6xf32>,
    %c0_i32_10 = arith.constant 0 : i32
    %20 = arith.cmpi eq, %arg1, %c0_i32_10 : i32
    %21 = arith.extui %20 : i1 to i32
    %c0_i32_11 = arith.constant 0 : i32
    %22 = arith.cmpi ne, %21, %c0_i32_11 : i32
    scf.if %22 {
      %c0_12 = arith.constant 0 : index
      %c0_13 = arith.constant 0 : index
      %23 = vector.load %arg5[%c0_12, %c0_13] : memref<1x6xf32, #tpu.memory_space<vmem>>, vector<1x6xf32>
      %24 = tpu.iota {dimensions = array<i32: 1>} : vector<1x6xi32>
      %c0_i32_14 = arith.constant 0 : i32
      %25 = vector.broadcast %c0_i32_14 : i32 to vector<1x6xi32>
      %26 = arith.cmpi eq, %24, %25 : vector<1x6xi32>
      %cst_15 = arith.constant 2.000000e+00 : f32
      %cst_16 = arith.constant 1.000000e+00 : f32
      %27 = vector.broadcast %cst_15 : f32 to vector<1x6xf32>
      %28 = vector.broadcast %cst_16 : f32 to vector<1x6xf32>
      %29 = arith.select %26, %27, %28 : vector<1x6xi1>, vector<1x6xf32>
      %30 = arith.mulf %23, %29 : vector<1x6xf32>
      %31 = vector.shape_cast %30 : vector<1x6xf32> to vector<1x1x6xf32>
      %cst_17 = arith.constant dense<0.000000e+00> : vector<1xf32>
      %32 = vector.multi_reduction <add>, %31, %cst_17 [1, 2] : vector<1x1x6xf32> to vector<1xf32>
      %33 = vector.shape_cast %32 : vector<1xf32> to vector<1x1x1xf32>
      %34 = vector.extract %33[0, 0, 0] : f32 from vector<1x1x1xf32>
      %35 = vector.broadcast %34 : f32 to vector<1x8x128xf32>
      %c0_18 = arith.constant 0 : index
      %c0_19 = arith.constant 0 : index
      %c0_20 = arith.constant 0 : index
      %36 = vector.load %arg4[%c0_18, %c0_19, %c0_20] : memref<1x8x128xf32, #tpu.memory_space<vmem>>, vector<1x8x128xf32>
      tpu.vector_store %arg4[%c0_18, %c0_19, %c0_20], %35 {strides = array<i32>} : memref<1x8x128xf32, #tpu.memory_space<vmem>>, vector<1x8x128xf32>,
    } else {
    }
    return
  }
  func.func @transform_0(%arg0: i32, %arg1: i32) -> (i32, i32) {
    %c1_i32 = arith.constant 1 : i32
    %0 = arith.muli %arg0, %c1_i32 : i32
    %1 = arith.addi %0, %arg1 : i32
    %c0_i32 = arith.constant 0 : i32
    %c0_i32_0 = arith.constant 0 : i32
    return %1, %c0_i32 : i32, i32
  }
  func.func @transform_1(%arg0: i32, %arg1: i32) -> (i32, i32) {
    %c1_i32 = arith.constant 1 : i32
    %0 = arith.muli %arg0, %c1_i32 : i32
    %1 = arith.addi %0, %arg1 : i32
    %c0_i32 = arith.constant 0 : i32
    %c0_i32_0 = arith.constant 0 : i32
    return %1, %c0_i32 : i32, i32
  }
  func.func @transform_2(%arg0: i32, %arg1: i32) -> (i32, i32, i32) {
    %c0_i32 = arith.constant 0 : i32
    %c0_i32_0 = arith.constant 0 : i32
    %c0_i32_1 = arith.constant 0 : i32
    return %arg0, %c0_i32, %c0_i32_0 : i32, i32, i32
  }
}

</mosaic_0001>

<llo_original>
// kernel: tpu_custom_call.1
$region0: #{tpu_custom_call.1}
  #allocation0 [shape = 'u32[]', space=smem, size = 0x4, offset = 0x4, fixed_abs, tag = 'smem constant byte address 0x4 - core index']
  #allocation1 [shape = 'u32[144,128]{1,0:T(1,128)}', space=vmem, size = 0x12000, scoped, tag = 'internal scratch']
  #allocation2 [shape = 'f32[1,6]{1,0:T(1,128)}', space=vmem, size = 0x200, scoped, tag = 'scratch operand']
  %s0 = inlined_call_operand.hbm [shape: f32[8,6], index: 0, kind: input, shape index: {}]
  %s1 = inlined_call_operand.hbm [shape: f32[8,6], index: 1, kind: input, shape index: {}]
  %s2 = inlined_call_operand.hbm [shape: f32[1,8,128], index: 2, kind: output, shape index: {}]
  %s3 = sld [smem:[#allocation0]]
  $region34: #{tpu_custom_call.1} parent=0
    _
  %s5 = ssub.s32 1, %s3
  %s6 = scalar_select 0, %s5, %s3
  $region1: #{tpu_custom_call.1} parent=0
    #allocation3 [shape = 'u8[4096]{0}', space=vmem, size = 0x1000, scoped, tag = 'input window, operand 0, single buffered']
    #allocation4 [shape = 's32[1]{0}', space=sflag, size = 0x4, scoped, tag = 'scoped memory for tpu_custom_call.1']
    #allocation5 [shape = 's32[1]{0}', space=sflag, size = 0x4, scoped, tag = 'scoped memory for tpu_custom_call.1']
    #allocation6 [shape = 'u8[4096]{0}', space=vmem, size = 0x1000, scoped, tag = 'input window, operand 1, single buffered']
    #allocation7 [shape = 's32[1]{0}', space=sflag, size = 0x4, scoped, tag = 'scoped memory for tpu_custom_call.1']
    #allocation8 [shape = 'u8[4096]{0}', space=vmem, size = 0x1000, scoped, tag = 'output window, operand 0, single buffered']
    %7 = vsyncpa [#allocation4], 0
    %8 = vsyncpa [#allocation7], 0
    %9 = vsyncpa [#allocation5], 0
    // Predicated region
    $region2: #{tpu_custom_call.1} parent=1 // pred_check
      _
    $region3: #{tpu_custom_call.1} parent=1 // pred_check_branch
      %11 = sbr.rel (0) target = $region5
    $region4: #{tpu_custom_call.1} parent=1 // pred_region
      %s12 = sadd.s32 0, 0
      %s14 = ssub.s32 128, 128
      %15 = vsyncadd [#allocation4], %s14
      %s16 = smul.addr %s12, 128
      %s17 = scalar_lea.hbm %s0, %s16
      %s19 = sshll.u32 [#allocation3], 4
      %s20 = int_to_ptr.vmem [resolvable:$true] %s19
      %22 = dma.hbm_to_vmem [thread:$0]  %s17, 128, %s20, [#allocation4]
    $region5: #{tpu_custom_call.1} parent=1 // pred_fallthru
      _
    // Predicated region
    $region6: #{tpu_custom_call.1} parent=1 // pred_check
      _
    $region7: #{tpu_custom_call.1} parent=1 // pred_check_branch
      %24 = sbr.rel (0) target = $region9
    $region8: #{tpu_custom_call.1} parent=1 // pred_region
      %s25 = sadd.s32 0, 0
      %s27 = ssub.s32 128, 128
      %28 = vsyncadd [#allocation7], %s27
      %s29 = smul.addr %s25, 128
      %s30 = scalar_lea.hbm %s1, %s29
      %s32 = sshll.u32 [#allocation6], 4
      %s33 = int_to_ptr.vmem [resolvable:$true] %s32
      %35 = dma.hbm_to_vmem [thread:$0]  %s30, 128, %s33, [#allocation7]
    $region9: #{tpu_custom_call.1} parent=1 // pred_fallthru
      _
    // Predicated region
    $region10: #{tpu_custom_call.1} parent=1 // pred_check
      _
    $region11: #{tpu_custom_call.1} parent=1 // pred_check_branch
      %37 = sbr.rel (0) target = $region13
    $region12: #{tpu_custom_call.1} parent=1 // pred_region
      %38 = dma.done [#allocation4], 128
    $region13: #{tpu_custom_call.1} parent=1 // pred_fallthru
      _
    // Predicated region
    $region14: #{tpu_custom_call.1} parent=1 // pred_check
      _
    $region15: #{tpu_custom_call.1} parent=1 // pred_check_branch
      %40 = sbr.rel (0) target = $region17
    $region16: #{tpu_custom_call.1} parent=1 // pred_region
      %41 = dma.done [#allocation7], 128
    $region17: #{tpu_custom_call.1} parent=1 // pred_fallthru
      _
    %s42 = sadd.s32 0, 0
    %s43 = sadd.s32 0, 0
    %p44 = scmp.eq.s32.totalorder 0, 0
    // Predicated region
    $region18: #{tpu_custom_call.1} parent=1 // pred_check
      %p45 = pneg %p44
    $region19: #{tpu_custom_call.1} parent=1 // pred_check_branch
      %47 = sbr.rel (%p45) target = $region21
    $region20: #{tpu_custom_call.1} parent=1 // pred_region
      %vm48 = vcmask 40960
      %49 = vst.msk [vmem:[#allocation2] sm:$0x1] %vm48, 0.0
    $region21: #{tpu_custom_call.1} parent=1 // pred_fallthru
      _
    %v50 = vld [vmem:[#allocation3] sm:$0xff]
    %v51 = vld [vmem:[#allocation6] sm:$0xff]
    %v52 = vmax.f32 %v50, 0.0
    %v53 = vmul.f32 %v50, %v51
    %v54 = vsub.f32 %v52, %v53
    %v55 = vand.u32 2147483647, %v50
    %v56 = vsub.f32 0.0, %v55
    %v57 = vmul.f32 %v56, 1.442695
    %v58 = vpow.pop %v57
    %v59 = vadd.f32 %v58, 1.0
    %v60 = vlog2.pop %v59
    %v61 = vmul.f32 %v60, 0.6931472
    %v62 = vmul.f32 -0.5, %v58
    %v63 = vadd.f32 %v62, 1.0
    %v64 = vmul.f32 %v63, %v58
    %v65 = vand.u32 2147483647, %v58
    %vm66 = vcmp.lt.f32.partialorder %v65, 0.0004427343
    %v67 = vsel %vm66, %v64, %v61
    %v68 = vadd.f32 %v54, %v67
    %v69 = vld [vmem:[#allocation2] sm:$0x1]
    %vm70 = vcmask 48128
    %v71 = vsel %vm70, %v68, 0.0
    %v72 = vrot.slane %v71, 4
    %v73 = vadd.f32 %v71, %v72
    %v74 = vrot.slane %v73, 2
    %v75 = vadd.f32 %v73, %v74
    %v76 = vrot.slane %v75, 1
    %v77 = vadd.f32 %v75, %v76
    %v78 = vadd.f32 %v69, %v77
    %vm79 = vcmask 40960
    %80 = vst.msk [vmem:[#allocation2] sm:$0x1] %vm79, %v78
    // Predicated region
    $region22: #{tpu_custom_call.1} parent=1 // pred_check
      %p81 = pneg %p44
    $region23: #{tpu_custom_call.1} parent=1 // pred_check_branch
      %83 = sbr.rel (%p81) target = $region25
    $region24: #{tpu_custom_call.1} parent=1 // pred_region
      %v84 = vld [vmem:[#allocation2] sm:$0x1]
      %v85 = vlaneseq
      %v86 = vand.u32 %v85, 127
      %vm87 = vcmp.eq.s32.totalorder %v86, 0
      %v88 = vsel %vm87, 2.0, 1.0
      %v89 = vmul.f32 %v84, %v88
      %v90 = vsel %vm79, %v89, 0.0
      %91 = vadd.xlane.f32.xlu0 %v90
      %v92 = vpop.xlane.xlu0 %91
      %v93 = vrot.slane %v92, 4
      %v94 = vadd.f32 %v92, %v93
      %v95 = vrot.slane %v94, 2
      %v96 = vadd.f32 %v94, %v95
      %v97 = vrot.slane %v96, 1
      %v98 = vadd.f32 %v96, %v97
      %s99 = vtos %v98
      %v100 = vstv %s99
      %101 = vst [vmem:[#allocation8] sm:$0xff] %v100
    $region25: #{tpu_custom_call.1} parent=1 // pred_fallthru
      _
    // Predicated region
    $region26: #{tpu_custom_call.1} parent=1 // pred_check
      _
    $region27: #{tpu_custom_call.1} parent=1 // pred_check_branch
      %103 = sbr.rel (0) target = $region29
    $region28: #{tpu_custom_call.1} parent=1 // pred_region
      %s105 = ssub.s32 128, 128
      %106 = vsyncadd [#allocation5], %s105
      %s108 = sshll.u32 [#allocation8], 4
      %s109 = int_to_ptr.vmem [resolvable:$true] %s108
      %111 = dma.vmem_to_hbm [thread:$0]  %s109, 128, %s2, [#allocation5]
    $region29: #{tpu_custom_call.1} parent=1 // pred_fallthru
      _
    // Predicated region
    $region30: #{tpu_custom_call.1} parent=1 // pred_check
      _
    $region31: #{tpu_custom_call.1} parent=1 // pred_check_branch
      %113 = sbr.rel (0) target = $region33
    $region32: #{tpu_custom_call.1} parent=1 // pred_region
      %114 = dma.done [#allocation5], 128
    $region33: #{tpu_custom_call.1} parent=1 // pred_fallthru
      _
    %115 = vsyncpa [#allocation4], 1
    %116 = vsyncpa [#allocation7], 1
    %117 = vsyncpa [#allocation5], 1

</llo_original>
